<compile_context>
chip_gen: v5e
topology: v5e:2x2
jax: 0.10.0
libtpu: 0.0.40
codegen_flags: <defaults>
</compile_context>

<pallas_src>
import jax
import jax.numpy as jnp
import numpy as np
from jax.experimental import pallas as pl
from jax.experimental.pallas import tpu as pltpu

LANE = 128
SUBLANE = 8


def _pick_vmem_limit():
    # 128 MiB physical VMEM on v5e/v6e -> 96 MiB scoped; 64 MiB on v7x -> 48 MiB.
    try:
        cap = pltpu.get_tpu_info().vmem_capacity_bytes
        if cap >= 128 * 1024 * 1024:
            return 96 * 1024 * 1024
        return 48 * 1024 * 1024
    except Exception:
        return 32 * 1024 * 1024


VMEM_LIMIT = _pick_vmem_limit()


def _rup(x, m):
    return ((x + m - 1) // m) * m


def _pad_to(x, shape):
    pads = [(0, t - s) for s, t in zip(x.shape, shape)]
    return jnp.pad(x, pads)


# --------------------------------------------------------------------------
# Kernel 1: per-sequence encoder projection (hoisted out of the decode step),
#           gridded over the flattened B*S row axis.
# --------------------------------------------------------------------------
def enc_proj_kernel(enc_ref, wa_e_ref, out_ref):
    # [rb, 2He_pad] (bf16) @ [2He_pad, Hd_pad] (bf16) -> f32
    out_ref[...] = jnp.dot(enc_ref[...], wa_e_ref[...],
                           preferred_element_type=jnp.float32)


# --------------------------------------------------------------------------
# Kernel 2: attention + weighted context + GRU step (small, VMEM-resident)
# TODO(synk): for very long source sequences on v7x, tile this kernel over S
# chunks with online-softmax accumulation instead of full enc/enc_proj residency.
# --------------------------------------------------------------------------
def attn_gru_kernel(
    emb_ref, hid_ref, enc_ref, encproj_ref, mask_ref,
    wa_h_ref, ba_ref, v_ref,
    wih_e_ref, wih_w_ref, bih_ref, whh_ref, bhh_ref,
    hnew_ref, act_ref, a_ref,
):
    emb = emb_ref[...]            # [B, E_pad]        f32
    hid = hid_ref[...]            # [B, Hd_pad]       f32
    enc = enc_ref[...]            # [B, S_pad, 2He]   bf16
    enc_proj = encproj_ref[...]   # [B, S_pad, Hd]    f32 (precomputed, hidden-independent)
    mask = mask_ref[...]          # [B, S_pad]        f32

    Hd = hid.shape[-1]
    He2 = enc.shape[-1]
    E = emb.shape[-1]

    # ---------------- attention ----------------
    # energy = tanh(enc_proj + hidden @ Wa_h + b_a)   (split over PyTorch's concat)
    hid_proj = jnp.dot(hid.astype(jnp.bfloat16), wa_h_ref[...],
                       preferred_element_type=jnp.float32)                     # [B, Hd]
    energy = jnp.tanh(enc_proj + hid_proj[:, None, :] + ba_ref[...][None, :, :])

    # scores = v . energy ; masked_fill(mask == 0, -1e10); softmax over src_len.
    scores = jnp.sum(energy * v_ref[...][None, :, :], axis=-1)                 # [B, S_pad]
    scores = jnp.where(mask == 0.0, -1e10, scores)
    m = jnp.max(scores, axis=-1, keepdims=True)
    e = jnp.exp(scores - m)
    a = e / jnp.sum(e, axis=-1, keepdims=True)   # exact reciprocal (accuracy budget)
    a_ref[...] = a

    # weighted = bmm(a.unsqueeze(1), enc) -> [B, 2He]
    # bf16 x bf16 on the MXU with f32 accumulation; no f32 copy of enc.
    weighted = jnp.einsum(
        "bqs,bse->bqe", a[:, None, :].astype(jnp.bfloat16), enc,
        preferred_element_type=jnp.float32)[:, 0, :]

    # ---------------- GRU step (PyTorch gate order r, z, n) ----------------
    gx = (jnp.dot(emb.astype(jnp.bfloat16), wih_e_ref[...],
                  preferred_element_type=jnp.float32)
          + jnp.dot(weighted.astype(jnp.bfloat16), wih_w_ref[...],
                    preferred_element_type=jnp.float32)
          + bih_ref[...])                                                      # [B, 3Hd]
    gh = jnp.dot(hid.astype(jnp.bfloat16), whh_ref[...],
                 preferred_element_type=jnp.float32) + bhh_ref[...]            # [B, 3Hd]

    r = jax.nn.sigmoid(gx[:, 0:Hd] + gh[:, 0:Hd])
    z = jax.nn.sigmoid(gx[:, Hd:2 * Hd] + gh[:, Hd:2 * Hd])
    n = jnp.tanh(gx[:, 2 * Hd:3 * Hd] + r * gh[:, 2 * Hd:3 * Hd])
    h_new = (1.0 - z) * n + z * hid
    hnew_ref[...] = h_new

    # Stacked bf16 activation for the vocab projection: [h_new | weighted | emb]
    # (cast ONCE here instead of per vocab tile; segments are 128-lane aligned).
    act_ref[:, 0:Hd] = h_new.astype(jnp.bfloat16)
    act_ref[:, Hd:Hd + He2] = weighted.astype(jnp.bfloat16)
    act_ref[:, Hd + He2:Hd + He2 + E] = emb.astype(jnp.bfloat16)


# --------------------------------------------------------------------------
# Kernel 3: output projection, tiled over the vocab dimension (gridded).
# Single stacked bf16 matmul per tile + bias.
# --------------------------------------------------------------------------
def out_proj_kernel(act_ref, w_ref, b_ref, logits_ref):
    logits_ref[...] = (jnp.dot(act_ref[...], w_ref[...],
                               preferred_element_type=jnp.float32)
                       + b_ref[...])


# --------------------------------------------------------------------------
# Parameter preparation: pad feature dims to 128, cast weights to bf16 (once),
# stack the output-projection weights into a single matrix.
# --------------------------------------------------------------------------
def prepare_params(p, output_dim, emb_dim, enc_hid, dec_hid, out_tile=512):
    E_pad = _rup(emb_dim, LANE)
    Hd_pad = _rup(dec_hid, LANE)
    He2 = 2 * enc_hid
    He2_pad = _rup(He2, LANE)
    O_pad = _rup(output_dim, out_tile)
    K_pad = Hd_pad + He2_pad + E_pad
    bf16 = jnp.bfloat16

    def pad2(w, r, c, dtype):
        return _pad_to(w, (r, c)).astype(dtype)

    def pad_gates(w, in_pad):
        # [in, 3*Hd] -> [in_pad, 3*Hd_pad], padding each gate block separately.
        i = w.shape[0]
        w3 = w.reshape(i, 3, dec_hid)
        w3 = jnp.pad(w3, ((0, in_pad - i), (0, 0), (0, Hd_pad - dec_hid)))
        return w3.reshape(in_pad, 3 * Hd_pad)

    # Stacked output weight: rows ordered [h_new | weighted | emb] to match the
    # kernel's stacked activation layout.
    wo_stacked = jnp.concatenate([
        _pad_to(p["wo_h"], (Hd_pad, O_pad)),
        _pad_to(p["wo_w"], (He2_pad, O_pad)),
        _pad_to(p["wo_e"], (E_pad, O_pad)),
    ], axis=0).astype(bf16)                                   # [K_pad, O_pad]

    kp = {
        "emb_table": _pad_to(p["embedding"], (output_dim, E_pad)),
        "wa_h": pad2(p["wa_h"], Hd_pad, Hd_pad, bf16),
        "wa_e": pad2(p["wa_e"], He2_pad, Hd_pad, bf16),
        "b_a": pad2(p["b_a"], 1, Hd_pad, jnp.float32),
        "v": pad2(p["v"], 1, Hd_pad, jnp.float32),
        "wih_e": pad_gates(p["wih_e"], E_pad).astype(bf16),
        "wih_w": pad_gates(p["wih_w"], He2_pad).astype(bf16),
        "b_ih": pad_gates(p["b_ih"], 1).astype(jnp.float32),
        "whh": pad_gates(p["whh"], Hd_pad).astype(bf16),
        "b_hh": pad_gates(p["b_hh"], 1).astype(jnp.float32),
        "wo_stacked": wo_stacked,
        "b_o": pad2(p["b_o"], 1, O_pad, jnp.float32),
    }
    dims = dict(E=emb_dim, Hd=dec_hid, He2=He2, O=output_dim,
                E_pad=E_pad, Hd_pad=Hd_pad, He2_pad=He2_pad, O_pad=O_pad,
                K_pad=K_pad, TN=out_tile)
    return kp, dims


# --------------------------------------------------------------------------
# Per-sequence precompute (hoisted out of the per-token decode loop).
# Gridded over B_pad*S_pad rows so the DMA is pipelined and VMEM use is bounded.
# --------------------------------------------------------------------------
def precompute_encoder(encoder_outputs, kp, dims):
    S, B, _ = encoder_outputs.shape
    B_pad = _rup(B, SUBLANE)
    S_pad = _rup(S, LANE)

    enc = jnp.transpose(encoder_outputs, (1, 0, 2)).astype(jnp.float32)   # [B, S, 2He]
    enc = _pad_to(enc, (B_pad, S_pad, dims["He2_pad"]))
    enc_bf = enc.astype(jnp.bfloat16)                                      # [B_pad, S_pad, 2He_pad]

    R = B_pad * S_pad                          # multiple of 1024 (8 * 128)
    rb = 512 if R % 512 == 0 else R            # row block
    enc_flat = enc_bf.reshape(R, dims["He2_pad"])

    enc_proj_flat = pl.pallas_call(
        enc_proj_kernel,
        out_shape=jax.ShapeDtypeStruct((R, dims["Hd_pad"]), jnp.float32),
        grid=(R // rb,),
        in_specs=[
            pl.BlockSpec((rb, dims["He2_pad"]), lambda i: (i, 0)),
            pl.BlockSpec((dims["He2_pad"], dims["Hd_pad"]), lambda i: (0, 0)),
        ],
        out_specs=pl.BlockSpec((rb, dims["Hd_pad"]), lambda i: (i, 0)),
        compiler_params=pltpu.CompilerParams(
            dimension_semantics=("parallel",),
            vmem_limit_bytes=VMEM_LIMIT),
    )(enc_flat, kp["wa_e"])
    enc_proj = enc_proj_flat.reshape(B_pad, S_pad, dims["Hd_pad"])
    return {"enc": enc_bf, "enc_proj": enc_proj,
            "B": B, "B_pad": B_pad, "S": S, "S_pad": S_pad}


# --------------------------------------------------------------------------
# One decode step
# --------------------------------------------------------------------------
def decoder_forward(tokens, hidden, mask, kp, dims, cache):
    B, B_pad, S, S_pad = cache["B"], cache["B_pad"], cache["S"], cache["S_pad"]
    Hd, O = dims["Hd"], dims["O"]
    Hd_pad, He2_pad = dims["Hd_pad"], dims["He2_pad"]
    E_pad, O_pad, K_pad, TN = dims["E_pad"], dims["O_pad"], dims["K_pad"], dims["TN"]

    # TODO(synk): dropout is eval-mode identity; embedding gather stays in JAX
    # (could be fused via scalar-prefetched token ids + pl.Element row gather).
    emb = jnp.take(kp["emb_table"], tokens, axis=0)                 # [B, E_pad]
    emb = _pad_to(emb, (B_pad, E_pad))
    hid = _pad_to(hidden.astype(jnp.float32), (B_pad, Hd_pad))
    msk = _pad_to(mask.astype(jnp.float32), (B_pad, S_pad))         # padded S -> mask 0

    # ---- attention + GRU (small, monolithic VMEM kernel) ----
    vmem = pl.BlockSpec(memory_space=pltpu.MemorySpace.VMEM)
    h_new_p, act_bf, a_p = pl.pallas_call(
        attn_gru_kernel,
        out_shape=(jax.ShapeDtypeStruct((B_pad, Hd_pad), jnp.float32),
                   jax.ShapeDtypeStruct((B_pad, K_pad), jnp.bfloat16),
                   jax.ShapeDtypeStruct((B_pad, S_pad), jnp.float32)),
        in_specs=[vmem] * 13,
        out_specs=(vmem, vmem, vmem),
        compiler_params=pltpu.CompilerParams(vmem_limit_bytes=VMEM_LIMIT),
    )(emb, hid, cache["enc"], cache["enc_proj"], msk,
      kp["wa_h"], kp["b_a"], kp["v"],
      kp["wih_e"], kp["wih_w"], kp["b_ih"], kp["whh"], kp["b_hh"])

    # ---- output projection: vocab-tiled grid (TN=512), stacked bf16 weights ----
    grid = (O_pad // TN,)
    logits_p = pl.pallas_call(
        out_proj_kernel,
        out_shape=jax.ShapeDtypeStruct((B_pad, O_pad), jnp.float32),
        grid=grid,
        in_specs=[
            pl.BlockSpec((B_pad, K_pad), lambda j: (0, 0)),      # activation resident
            pl.BlockSpec((K_pad, TN), lambda j: (0, j)),         # weight tile streamed
            pl.BlockSpec((1, TN), lambda j: (0, j)),             # bias tile
        ],
        out_specs=pl.BlockSpec((B_pad, TN), lambda j: (0, j)),
        compiler_params=pltpu.CompilerParams(
            dimension_semantics=("parallel",),
            vmem_limit_bytes=VMEM_LIMIT),
    )(act_bf, kp["wo_stacked"], kp["b_o"])

    return logits_p[:B, :O], h_new_p[:B, :Hd], a_p[:B, :S]


# --------------------------------------------------------------------------
# Pure-JAX reference (mirrors the kernel's bf16 weight/activation rounding)
# --------------------------------------------------------------------------
def decoder_reference(tokens, hidden, encoder_outputs, mask, p):
    bf = lambda x: x.astype(jnp.bfloat16).astype(jnp.float32)
    embedded = jnp.take(p["embedding"], tokens, axis=0)
    enc = jnp.transpose(encoder_outputs, (1, 0, 2))
    enc_b = bf(enc)
    enc_proj = jnp.einsum("bse,ed->bsd", enc_b, bf(p["wa_e"]))
    hid_proj = bf(hidden) @ bf(p["wa_h"])
    energy = jnp.tanh(enc_proj + hid_proj[:, None, :] + p["b_a"])
    scores = jnp.einsum("bsd,d->bs", energy, p["v"][0])
    scores = jnp.where(mask == 0, -1e10, scores)
    a = jax.nn.softmax(scores, axis=1)
    weighted = jnp.einsum("bs,bse->be", bf(a), enc_b)
    gx = bf(embedded) @ bf(p["wih_e"]) + bf(weighted) @ bf(p["wih_w"]) + p["b_ih"]
    gh = bf(hidden) @ bf(p["whh"]) + p["b_hh"]
    Hd = hidden.shape[-1]
    r = jax.nn.sigmoid(gx[:, :Hd] + gh[:, :Hd])
    z = jax.nn.sigmoid(gx[:, Hd:2 * Hd] + gh[:, Hd:2 * Hd])
    n = jnp.tanh(gx[:, 2 * Hd:] + r * gh[:, 2 * Hd:])
    h_new = (1.0 - z) * n + z * hidden
    logits = (bf(h_new) @ bf(p["wo_h"]) + bf(weighted) @ bf(p["wo_w"])
              + bf(embedded) @ bf(p["wo_e"]) + p["b_o"])
    return logits, h_new, a


def init_params(key, output_dim, emb_dim, enc_hid, dec_hid):
    ks = jax.random.split(key, 14)
    s = 0.1
    He2 = 2 * enc_hid
    f32 = jnp.float32
    return {
        "embedding": s * jax.random.normal(ks[0], (output_dim, emb_dim), f32),
        # attention: Linear(He2 + dec_hid -> dec_hid); concat order = (hidden, enc)
        "wa_h": s * jax.random.normal(ks[1], (dec_hid, dec_hid), f32),
        "wa_e": s * jax.random.normal(ks[2], (He2, dec_hid), f32),
        "b_a": s * jax.random.normal(ks[3], (1, dec_hid), f32),
        "v": s * jax.random.normal(ks[4], (1, dec_hid), f32),
        # GRU: input = cat(embedded, weighted); gate order (r, z, n)
        "wih_e": s * jax.random.normal(ks[5], (emb_dim, 3 * dec_hid), f32),
        "wih_w": s * jax.random.normal(ks[6], (He2, 3 * dec_hid), f32),
        "b_ih": s * jax.random.normal(ks[7], (1, 3 * dec_hid), f32),
        "whh": s * jax.random.normal(ks[8], (dec_hid, 3 * dec_hid), f32),
        "b_hh": s * jax.random.normal(ks[9], (1, 3 * dec_hid), f32),
        # out: Linear(dec_hid + He2 + emb_dim -> output_dim)
        "wo_h": s * jax.random.normal(ks[10], (dec_hid, output_dim), f32),
        "wo_w": s * jax.random.normal(ks[11], (He2, output_dim), f32),
        "wo_e": s * jax.random.normal(ks[12], (emb_dim, output_dim), f32),
        "b_o": s * jax.random.normal(ks[13], (1, output_dim), f32),
    }


if __name__ == "__main__":
    B, S = 2, 8
    output_dim, emb_dim, enc_hid, dec_hid = 32, 16, 32, 32

    key = jax.random.PRNGKey(0)
    kparam, kt, kh, ke = jax.random.split(key, 4)

    params = init_params(kparam, output_dim, emb_dim, enc_hid, dec_hid)

    tokens = jax.random.randint(kt, (B,), 0, output_dim, dtype=jnp.int32)        # [B]
    hidden = jax.random.normal(kh, (B, dec_hid), jnp.float32)                    # [B, dec_hid]
    encoder_outputs = jax.random.normal(ke, (S, B, 2 * enc_hid), jnp.float32)    # [S, B, 2*enc_hid]
    lengths = jnp.array([S, 5], dtype=jnp.int32)
    mask = (jnp.arange(S)[None, :] < lengths[:, None]).astype(jnp.float32)       # [B, S]

    # One-time: pad + bf16-cast + stack weights; per-sequence: hoisted encoder projection.
    kparams, dims = prepare_params(params, output_dim, emb_dim, enc_hid, dec_hid)
    cache = precompute_encoder(encoder_outputs, kparams, dims)

    # Per-token decode step (attention + GRU + vocab-tiled output projection).
    logits, h_new, attn = decoder_forward(tokens, hidden, mask, kparams, dims, cache)
    jax.block_until_ready((logits, h_new, attn))

    ref_logits, ref_h, ref_a = decoder_reference(tokens, hidden, encoder_outputs, mask, params)
    assert np.allclose(np.asarray(logits), np.asarray(ref_logits), atol=5e-3, rtol=5e-3), "logits mismatch"
    assert np.allclose(np.asarray(h_new), np.asarray(ref_h), atol=5e-3, rtol=5e-3), "hidden mismatch"
    assert np.allclose(np.asarray(attn), np.asarray(ref_a), atol=5e-3, rtol=5e-3), "attention mismatch"

    print("KERNEL_OK")
</pallas_src>

<mosaic_0001>
module attributes {stable_mosaic.version = 11 : i64} {
  func.func @enc_proj_kernel(%arg0: i32, %arg1: memref<512x128xbf16, #tpu.memory_space<vmem>>, %arg2: memref<128x128xbf16, #tpu.memory_space<vmem>>, %arg3: memref<512x128xf32, #tpu.memory_space<vmem>>) attributes {dimension_semantics = [#tpu.dimension_semantics<parallel>], iteration_bounds = array<i64: 2>, scalar_prefetch = 0 : i64, scratch_operands = 0 : i64, tpu.core_type = #tpu.core_type<tc>, window_params = [{transform_indices = @transform_0, window_bounds = array<i64: 512, 128>}, {pipeline_mode = #tpu.pipeline_mode<synchronous>, transform_indices = @transform_1, window_bounds = array<i64: 128, 128>}, {transform_indices = @transform_2, window_bounds = array<i64: 512, 128>}]} {
    %c0 = arith.constant 0 : index
    %c0_0 = arith.constant 0 : index
    %0 = vector.load %arg1[%c0, %c0_0] : memref<512x128xbf16, #tpu.memory_space<vmem>>, vector<512x128xbf16>
    %c0_1 = arith.constant 0 : index
    %c0_2 = arith.constant 0 : index
    %1 = vector.load %arg2[%c0_1, %c0_2] : memref<128x128xbf16, #tpu.memory_space<vmem>>, vector<128x128xbf16>
    %cst = arith.constant dense<0.000000e+00> : vector<512x128xf32>
    %2 = tpu.matmul %0, %1, %cst {dimension_numbers = #tpu.dot_dimension_numbers<[1], [0], [0], [1], [0, 0, 1, 1], [], []>} : vector<512x128xbf16>, vector<128x128xbf16>, vector<512x128xf32> -> vector<512x128xf32>
    %c0_3 = arith.constant 0 : index
    %c0_4 = arith.constant 0 : index
    %3 = vector.load %arg3[%c0_3, %c0_4] : memref<512x128xf32, #tpu.memory_space<vmem>>, vector<512x128xf32>
    tpu.vector_store %arg3[%c0_3, %c0_4], %2 {strides = array<i32>} : memref<512x128xf32, #tpu.memory_space<vmem>>, vector<512x128xf32>,
    return
  }
  func.func @transform_0(%arg0: i32) -> (i32, i32) {
    %c0_i32 = arith.constant 0 : i32
    %c0_i32_0 = arith.constant 0 : i32
    return %arg0, %c0_i32 : i32, i32
  }
  func.func @transform_1(%arg0: i32) -> (i32, i32) {
    %c0_i32 = arith.constant 0 : i32
    %c0_i32_0 = arith.constant 0 : i32
    %c0_i32_1 = arith.constant 0 : i32
    return %c0_i32, %c0_i32_0 : i32, i32
  }
  func.func @transform_2(%arg0: i32) -> (i32, i32) {
    %c0_i32 = arith.constant 0 : i32
    %c0_i32_0 = arith.constant 0 : i32
    return %arg0, %c0_i32 : i32, i32
  }
}

</mosaic_0001>

<llo_original>
// kernel: tpu_custom_call.1
$region0: #{tpu_custom_call.1}
  #allocation0 [shape = 'u32[]', space=smem, size = 0x4, offset = 0x4, fixed_abs, tag = 'smem constant byte address 0x4 - core index']
  #allocation1 [shape = 'u32[72,128]{1,0:T(1,128)}', space=vmem, size = 0x9000, scoped, tag = 'internal scratch']
  %s0 = inlined_call_operand.hbm [shape: bf16[1024,128], index: 0, kind: input, shape index: {}]
  %s1 = inlined_call_operand.hbm [shape: bf16[128,128], index: 1, kind: input, shape index: {}]
  %s2 = inlined_call_operand.hbm [shape: f32[1024,128], index: 2, kind: output, shape index: {}]
  %s3 = sld [smem:[#allocation0]]
  $region49: #{tpu_custom_call.1} parent=0
    _
  %s5 = ssub.s32 1, %s3
  %s6 = scalar_select 0, %s5, %s3
  $region1: #{tpu_custom_call.1} parent=0
    #allocation2 [shape = 'u8[262144]{0}', space=vmem, size = 0x40000, scoped, tag = 'input window, operand 0']
    #allocation3 [shape = 's32[2]{0}', space=sflag, size = 0x8, scoped, tag = 'scoped memory for tpu_custom_call.1']
    #allocation4 [shape = 's32[2]{0}', space=sflag, size = 0x8, scoped, tag = 'scoped memory for tpu_custom_call.1']
    #allocation5 [shape = 'u8[32768]{0}', space=vmem, size = 0x8000, scoped, tag = 'input window, operand 1, single buffered']
    #allocation6 [shape = 's32[1]{0}', space=sflag, size = 0x4, scoped, tag = 'scoped memory for tpu_custom_call.1']
    #allocation7 [shape = 'u8[524288]{0}', space=vmem, size = 0x80000, scoped, tag = 'output window, operand 0']
    %7 = vsyncpa [#allocation3], 0
    %s8 = scalar_lea.sflag [#allocation3], 1
    %9 = vsyncpa %s8, 0
    %10 = vsyncpa [#allocation6], 0
    %11 = vsyncpa [#allocation4], 0
    %s12 = scalar_lea.sflag [#allocation4], 1
    %13 = vsyncpa %s12, 0
    loop: start=0, step=1, limit=4
    $region2: #{tpu_custom_call.1} parent=1 // loop_pre_header
      _
    $region3: #{tpu_custom_call.1} parent=1 // loop_header
      %s15 = sphi 0, %s19
      %p16 = scmp.ge.s32.totalorder %s15, 4
      %s25 = sphi 0, %s27
      %s28 = sphi 0, %s25
      %s29 = sphi 0, %s28
      %s45 = sphi 0, %s29
      %s49 = sphi 0, %s49
      %s51 = sphi 0, %s49
      %s52 = sphi 0, %s51
      %s66 = sphi 0, %s52
      %s72 = sphi 0, %s74
      %s75 = sphi 0, %s72
      %s76 = sphi 0, %s75
      %s92 = sphi 0, %s76
    $region4: #{tpu_custom_call.1} parent=1 // loop_header_branch
      %18 = sbr.rel (%p16) target = $region8
    $region5: #{tpu_custom_call.1} parent=1 // loop_body
      %s20 = ssub.s32 %s15, 1
      %s21 = ssub.s32 %s15, 2
      %s22 = sadd.s32 %s15, 1
      %s23 = ssub.s32 %s15, %s22
      %p24 = scmp.eq.s32.totalorder %s23, 0
      %s26 = sadd.s32 %s25, 1
      %s27 = scalar_select %p24, %s25, %s26
      %p30 = pneg %p24
      %p31 = scmp.eq.s32.totalorder %s15, 1
      %p32 = por %p30, %p31
      %p33 = scmp.ne.s32.totalorder %s25, %s28
      %p34 = scmp.eq.s32.totalorder %s15, 0
      %p35 = por %p33, %p34
      %p36 = scmp.ne.s32.totalorder %s25, %s28
      %p37 = scmp.eq.s32.totalorder %s20, 1
      %p38 = por %p36, %p37
      %p39 = scmp.ne.s32.totalorder %s28, %s29
      %p40 = scmp.eq.s32.totalorder %s20, 0
      %p41 = por %p39, %p40
      %p42 = scmp.ne.s32.totalorder %s28, %s29
      %p43 = scmp.eq.s32.totalorder %s21, 1
      %p44 = por %p42, %p43
      %p46 = scmp.ne.s32.totalorder %s29, %s45
      %p47 = scmp.eq.s32.totalorder %s21, 0
      %p48 = por %p46, %p47
      %s50 = sadd.s32 %s49, 1
      %p53 = scmp.eq.s32.totalorder %s15, 1
      %p54 = scmp.ne.s32.totalorder %s49, %s51
      %p55 = scmp.eq.s32.totalorder %s15, 0
      %p56 = por %p54, %p55
      %p57 = scmp.ne.s32.totalorder %s49, %s51
      %p58 = scmp.eq.s32.totalorder %s20, 1
      %p59 = por %p57, %p58
      %p60 = scmp.ne.s32.totalorder %s51, %s52
      %p61 = scmp.eq.s32.totalorder %s20, 0
      %p62 = por %p60, %p61
      %p63 = scmp.ne.s32.totalorder %s51, %s52
      %p64 = scmp.eq.s32.totalorder %s21, 1
      %p65 = por %p63, %p64
      %p67 = scmp.ne.s32.totalorder %s52, %s66
      %p68 = scmp.eq.s32.totalorder %s21, 0
      %p69 = por %p67, %p68
      %s70 = ssub.s32 %s15, %s22
      %p71 = scmp.eq.s32.totalorder %s70, 0
      %s73 = sadd.s32 %s72, 1
      %s74 = scalar_select %p71, %s72, %s73
      %p77 = pneg %p71
      %p78 = scmp.eq.s32.totalorder %s15, 1
      %p79 = por %p77, %p78
      %p80 = scmp.ne.s32.totalorder %s72, %s75
      %p81 = scmp.eq.s32.totalorder %s15, 0
      %p82 = por %p80, %p81
      %p83 = scmp.ne.s32.totalorder %s72, %s75
      %p84 = scmp.eq.s32.totalorder %s20, 1
      %p85 = por %p83, %p84
      %p86 = scmp.ne.s32.totalorder %s75, %s76
      %p87 = scmp.eq.s32.totalorder %s20, 0
      %p88 = por %p86, %p87
      %p89 = scmp.ne.s32.totalorder %s75, %s76
      %p90 = scmp.eq.s32.totalorder %s21, 1
      %p91 = por %p89, %p90
      %p93 = scmp.ne.s32.totalorder %s76, %s92
      %p94 = scmp.eq.s32.totalorder %s21, 0
      %p95 = por %p93, %p94
      %p96 = scmp.le.s32.totalorder 1, %s15
      %p97 = scmp.lt.s32.totalorder %s15, 3
      %p98 = pnand %p96, %p97
      %p99 = pneg %p98
      // Predicated region
      $region9: #{tpu_custom_call.1} parent=5 // pred_check
        _
      $region10: #{tpu_custom_call.1} parent=5 // pred_check_branch
        %101 = sbr.rel (%p98) target = $region12
      $region11: #{tpu_custom_call.1} parent=5 // pred_region
        %s102 = ssub.s32 %s15, 1
        // Predicated region
        $region13: #{tpu_custom_call.1} parent=11 // pred_check
          %p103 = pneg %p62
        $region14: #{tpu_custom_call.1} parent=11 // pred_check_branch
          %105 = sbr.rel (%p103) target = $region16
        $region15: #{tpu_custom_call.1} parent=11 // pred_region
          %107 = vsyncadd [#allocation6], 0
          %s108 = sshll.u32 %s1, 4
          %s109 = int_to_ptr.hbm [resolvable:$true] %s108
          %s110 = sshll.u32 [#allocation5], 4
          %s111 = int_to_ptr.vmem [resolvable:$true] %s110
          %116 = dma.hbm_to_vmem [thread:$0]  %s109, 1024, %s111, [#allocation6], 64, 64, 4
        $region16: #{tpu_custom_call.1} parent=11 // pred_fallthru
          _
      $region12: #{tpu_custom_call.1} parent=5 // pred_fallthru
        _
      %p117 = scmp.lt.s32.totalorder %s15, 2
      // Predicated region
      $region17: #{tpu_custom_call.1} parent=5 // pred_check
        %p118 = pneg %p117
      $region18: #{tpu_custom_call.1} parent=5 // pred_check_branch
        %120 = sbr.rel (%p118) target = $region20
      $region19: #{tpu_custom_call.1} parent=5 // pred_region
        // Predicated region
        $region21: #{tpu_custom_call.1} parent=19 // pred_check
          %p121 = pneg %p35
        $region22: #{tpu_custom_call.1} parent=19 // pred_check_branch
          %123 = sbr.rel (%p121) target = $region24
        $region23: #{tpu_custom_call.1} parent=19 // pred_region
          %s124 = sand.u32 %s25, 1
          %s125 = scalar_lea.sflag [#allocation3], %s124
          %s126 = sand.u32 %s25, 1
          %s127 = smul.addr %s126, 256
          %s128 = scalar_lea.vmem [#allocation2], %s127
          %s129 = smul.u32 64, %s15
          %131 = vsyncadd %s125, 0
          %s132 = smul.addr %s129, 4
          %s133 = scalar_lea.hbm %s0, %s132
          %s134 = sshll.u32 %s133, 4
          %s135 = int_to_ptr.hbm [resolvable:$true] %s134
          %s136 = sshll.u32 %s128, 4
          %s137 = int_to_ptr.vmem [resolvable:$true] %s136
          %142 = dma.hbm_to_vmem [thread:$0]  %s135, 4096, %s137, %s125, 64, 64, 4
        $region24: #{tpu_custom_call.1} parent=19 // pred_fallthru
          _
      $region20: #{tpu_custom_call.1} parent=5 // pred_fallthru
        _
      %p143 = scmp.le.s32.totalorder 1, %s15
      %p144 = scmp.lt.s32.totalorder %s15, 3
      %p145 = pnand %p143, %p144
      %p146 = pneg %p145
      // Predicated region
      $region25: #{tpu_custom_call.1} parent=5 // pred_check
        _
      $region26: #{tpu_custom_call.1} parent=5 // pred_check_branch
        %148 = sbr.rel (%p145) target = $region28
      $region27: #{tpu_custom_call.1} parent=5 // pred_region
        %s149 = ssub.s32 %s15, 1
        %s150 = sand.u32 %s28, 1
        %s151 = scalar_lea.sflag [#allocation3], %s150
        %s152 = sand.u32 %s28, 1
        %s153 = smul.addr %s152, 256
        %s154 = scalar_lea.vmem [#allocation2], %s153
        // Predicated region
        $region29: #{tpu_custom_call.1} parent=27 // pred_check
          %p155 = pneg %p41
        $region30: #{tpu_custom_call.1} parent=27 // pred_check_branch
          %157 = sbr.rel (%p155) target = $region32
        $region31: #{tpu_custom_call.1} parent=27 // pred_region
          %159 = dma.done %s151, 4096
        $region32: #{tpu_custom_call.1} parent=27 // pred_fallthru
          _
        // Predicated region
        $region33: #{tpu_custom_call.1} parent=27 // pred_check
          %p160 = pneg %p62
        $region34: #{tpu_custom_call.1} parent=27 // pred_check_branch
          %162 = sbr.rel (%p160) target = $region36
        $region35: #{tpu_custom_call.1} parent=27 // pred_region
          %164 = dma.done [#allocation6], 1024
        $region36: #{tpu_custom_call.1} parent=27 // pred_fallthru
          _
        %s165 = sand.u32 %s28, 1
        %s166 = scalar_lea.sflag [#allocation3], %s165
        %s167 = sand.u32 %s28, 1
        %s168 = smul.addr %s167, 256
        %s169 = scalar_lea.vmem [#allocation2], %s168
        %p170 = pneg %p41
        %p171 = pneg %p38
        %p172 = pneg %p62
        %p173 = pneg %p59
        %p174 = pneg %p88
        %p175 = pneg %p85
        %s176 = sand.u32 %s75, 1
        %s177 = scalar_lea.sflag [#allocation4], %s176
        %s178 = sand.u32 %s75, 1
        %s179 = smul.addr %s178, 512
        %s180 = scalar_lea.vmem [#allocation7], %s179
        %s181 = smul.u32 64, %s20
        %s182 = smul.u32 64, %s20
        %v183 = vld [vmem:[%s154] sm:$0xf]
        %v184 = vld [vmem:[%s154 + $0x4] sm:$0xf]
        %v185 = vld [vmem:[%s154 + $0x8] sm:$0xf]
        %v186 = vld [vmem:[%s154 + $0xc] sm:$0xf]
        %v187 = vld [vmem:[%s154 + $0x10] sm:$0xf]
        %v188 = vld [vmem:[%s154 + $0x14] sm:$0xf]
        %v189 = vld [vmem:[%s154 + $0x18] sm:$0xf]
        %v190 = vld [vmem:[%s154 + $0x1c] sm:$0xf]
        %v191 = vld [vmem:[%s154 + $0x20] sm:$0xf]
        %v192 = vld [vmem:[%s154 + $0x24] sm:$0xf]
        %v193 = vld [vmem:[%s154 + $0x28] sm:$0xf]
        %v194 = vld [vmem:[%s154 + $0x2c] sm:$0xf]
        %v195 = vld [vmem:[%s154 + $0x30] sm:$0xf]
        %v196 = vld [vmem:[%s154 + $0x34] sm:$0xf]
        %v197 = vld [vmem:[%s154 + $0x38] sm:$0xf]
        %v198 = vld [vmem:[%s154 + $0x3c] sm:$0xf]
        %v199 = vld [vmem:[%s154 + $0x40] sm:$0xf]
        %v200 = vld [vmem:[%s154 + $0x44] sm:$0xf]
        %v201 = vld [vmem:[%s154 + $0x48] sm:$0xf]
        %v202 = vld [vmem:[%s154 + $0x4c] sm:$0xf]
        %v203 = vld [vmem:[%s154 + $0x50] sm:$0xf]
        %v204 = vld [vmem:[%s154 + $0x54] sm:$0xf]
        %v205 = vld [vmem:[%s154 + $0x58] sm:$0xf]
        %v206 = vld [vmem:[%s154 + $0x5c] sm:$0xf]
        %v207 = vld [vmem:[%s154 + $0x60] sm:$0xf]
        %v208 = vld [vmem:[%s154 + $0x64] sm:$0xf]
        %v209 = vld [vmem:[%s154 + $0x68] sm:$0xf]
        %v210 = vld [vmem:[%s154 + $0x6c] sm:$0xf]
        %v211 = vld [vmem:[%s154 + $0x70] sm:$0xf]
        %v212 = vld [vmem:[%s154 + $0x74] sm:$0xf]
        %v213 = vld [vmem:[%s154 + $0x78] sm:$0xf]
        %v214 = vld [vmem:[%s154 + $0x7c] sm:$0xf]
        %v215 = vld [vmem:[%s154 + $0x80] sm:$0xf]
        %v216 = vld [vmem:[%s154 + $0x84] sm:$0xf]
        %v217 = vld [vmem:[%s154 + $0x88] sm:$0xf]
        %v218 = vld [vmem:[%s154 + $0x8c] sm:$0xf]
        %v219 = vld [vmem:[%s154 + $0x90] sm:$0xf]
        %v220 = vld [vmem:[%s154 + $0x94] sm:$0xf]
        %v221 = vld [vmem:[%s154 + $0x98] sm:$0xf]
        %v222 = vld [vmem:[%s154 + $0x9c] sm:$0xf]
        %v223 = vld [vmem:[%s154 + $0xa0] sm:$0xf]
        %v224 = vld [vmem:[%s154 + $0xa4] sm:$0xf]
        %v225 = vld [vmem:[%s154 + $0xa8] sm:$0xf]
        %v226 = vld [vmem:[%s154 + $0xac] sm:$0xf]
        %v227 = vld [vmem:[%s154 + $0xb0] sm:$0xf]
        %v228 = vld [vmem:[%s154 + $0xb4] sm:$0xf]
        %v229 = vld [vmem:[%s154 + $0xb8] sm:$0xf]
        %v230 = vld [vmem:[%s154 + $0xbc] sm:$0xf]
        %v231 = vld [vmem:[%s154 + $0xc0] sm:$0xf]
        %v232 = vld [vmem:[%s154 + $0xc4] sm:$0xf]
        %v233 = vld [vmem:[%s154 + $0xc8] sm:$0xf]
        %v234 = vld [vmem:[%s154 + $0xcc] sm:$0xf]
        %v235 = vld [vmem:[%s154 + $0xd0] sm:$0xf]
        %v236 = vld [vmem:[%s154 + $0xd4] sm:$0xf]
        %v237 = vld [vmem:[%s154 + $0xd8] sm:$0xf]
        %v238 = vld [vmem:[%s154 + $0xdc] sm:$0xf]
        %v239 = vld [vmem:[%s154 + $0xe0] sm:$0xf]
        %v240 = vld [vmem:[%s154 + $0xe4] sm:$0xf]
        %v241 = vld [vmem:[%s154 + $0xe8] sm:$0xf]
        %v242 = vld [vmem:[%s154 + $0xec] sm:$0xf]
        %v243 = vld [vmem:[%s154 + $0xf0] sm:$0xf]
        %v244 = vld [vmem:[%s154 + $0xf4] sm:$0xf]
        %v245 = vld [vmem:[%s154 + $0xf8] sm:$0xf]
        %v246 = vld [vmem:[%s154 + $0xfc] sm:$0xf]
        %v247 = vld [vmem:[#allocation5] sm:$0xf]
        %v248 = vld [vmem:[#allocation5 + $0x4] sm:$0xf]
        %v249 = vld [vmem:[#allocation5 + $0x8] sm:$0xf]
        %v250 = vld [vmem:[#allocation5 + $0xc] sm:$0xf]
        %v251 = vld [vmem:[#allocation5 + $0x10] sm:$0xf]
        %v252 = vld [vmem:[#allocation5 + $0x14] sm:$0xf]
        %v253 = vld [vmem:[#allocation5 + $0x18] sm:$0xf]
        %v254 = vld [vmem:[#allocation5 + $0x1c] sm:$0xf]
        %v255 = vld [vmem:[#allocation5 + $0x20] sm:$0xf]
        %v256 = vld [vmem:[#allocation5 + $0x24] sm:$0xf]
        %v257 = vld [vmem:[#allocation5 + $0x28] sm:$0xf]
        %v258 = vld [vmem:[#allocation5 + $0x2c] sm:$0xf]
        %v259 = vld [vmem:[#allocation5 + $0x30] sm:$0xf]
        %v260 = vld [vmem:[#allocation5 + $0x34] sm:$0xf]
        %v261 = vld [vmem:[#allocation5 + $0x38] sm:$0xf]
        %v262 = vld [vmem:[#allocation5 + $0x3c] sm:$0xf]
        %v327 = vunpack.c.l.b16 %v183
        %v328 = vunpack.c.l.b16 %v184
        %v329 = vunpack.c.l.b16 %v185
        %v330 = vunpack.c.l.b16 %v186
        %v331 = vunpack.c.l.b16 %v187
        %v332 = vunpack.c.l.b16 %v188
        %v333 = vunpack.c.l.b16 %v189
        %v334 = vunpack.c.l.b16 %v190
        %v335 = vunpack.c.l.b16 %v191
        %v336 = vunpack.c.l.b16 %v192
        %v337 = vunpack.c.l.b16 %v193
        %v338 = vunpack.c.l.b16 %v194
        %v339 = vunpack.c.l.b16 %v195
        %v340 = vunpack.c.l.b16 %v196
        %v341 = vunpack.c.l.b16 %v197
        %v342 = vunpack.c.l.b16 %v198
        %v343 = vunpack.c.l.b16 %v199
        %v344 = vunpack.c.l.b16 %v200
        %v345 = vunpack.c.l.b16 %v201
        %v346 = vunpack.c.l.b16 %v202
        %v347 = vunpack.c.l.b16 %v203
        %v348 = vunpack.c.l.b16 %v204
        %v349 = vunpack.c.l.b16 %v205
        %v350 = vunpack.c.l.b16 %v206
        %v351 = vunpack.c.l.b16 %v207
        %v352 = vunpack.c.l.b16 %v208
        %v353 = vunpack.c.l.b16 %v209
        %v354 = vunpack.c.l.b16 %v210
        %v355 = vunpack.c.l.b16 %v211
        %v356 = vunpack.c.l.b16 %v212
        %v357 = vunpack.c.l.b16 %v213
        %v358 = vunpack.c.l.b16 %v214
        %v359 = vunpack.c.l.b16 %v215
        %v360 = vunpack.c.l.b16 %v216
        %v361 = vunpack.c.l.b16 %v217
        %v362 = vunpack.c.l.b16 %v218
        %v363 = vunpack.c.l.b16 %v219
        %v364 = vunpack.c.l.b16 %v220
        %v365 = vunpack.c.l.b16 %v221
        %v366 = vunpack.c.l.b16 %v222
        %v367 = vunpack.c.l.b16 %v223
        %v368 = vunpack.c.l.b16 %v224
        %v369 = vunpack.c.l.b16 %v225
        %v370 = vunpack.c.l.b16 %v226
        %v371 = vunpack.c.l.b16 %v227
        %v372 = vunpack.c.l.b16 %v228
        %v373 = vunpack.c.l.b16 %v229
        %v374 = vunpack.c.l.b16 %v230
        %v375 = vunpack.c.l.b16 %v231
        %v376 = vunpack.c.l.b16 %v232
        %v377 = vunpack.c.l.b16 %v233
        %v378 = vunpack.c.l.b16 %v234
        %v379 = vunpack.c.l.b16 %v235
        %v380 = vunpack.c.l.b16 %v236
        %v381 = vunpack.c.l.b16 %v237
        %v382 = vunpack.c.l.b16 %v238
        %v383 = vunpack.c.l.b16 %v239
        %v384 = vunpack.c.l.b16 %v240
        %v385 = vunpack.c.l.b16 %v241
        %v386 = vunpack.c.l.b16 %v242
        %v387 = vunpack.c.l.b16 %v243
        %v388 = vunpack.c.l.b16 %v244
        %v389 = vunpack.c.l.b16 %v245
        %v390 = vunpack.c.l.b16 %v246
        %v391 = vpack.c.b16 %v328, %v327
        %v392 = vpack.c.b16 %v330, %v329
        %v393 = vpack.c.b16 %v332, %v331
        %v394 = vpack.c.b16 %v334, %v333
        %v395 = vpack.c.b16 %v336, %v335
        %v396 = vpack.c.b16 %v338, %v337
        %v397 = vpack.c.b16 %v340, %v339
        %v398 = vpack.c.b16 %v342, %v341
        %v399 = vpack.c.b16 %v344, %v343
        %v400 = vpack.c.b16 %v346, %v345
        %v401 = vpack.c.b16 %v348, %v347
        %v402 = vpack.c.b16 %v350, %v349
        %v403 = vpack.c.b16 %v352, %v351
        %v404 = vpack.c.b16 %v354, %v353
        %v405 = vpack.c.b16 %v356, %v355
        %v406 = vpack.c.b16 %v358, %v357
        %v407 = vpack.c.b16 %v360, %v359
        %v408 = vpack.c.b16 %v362, %v361
        %v409 = vpack.c.b16 %v364, %v363
        %v410 = vpack.c.b16 %v366, %v365
        %v411 = vpack.c.b16 %v368, %v367
        %v412 = vpack.c.b16 %v370, %v369
        %v413 = vpack.c.b16 %v372, %v371
        %v414 = vpack.c.b16 %v374, %v373
        %v415 = vpack.c.b16 %v376, %v375
        %v416 = vpack.c.b16 %v378, %v377
        %v417 = vpack.c.b16 %v380, %v379
        %v418 = vpack.c.b16 %v382, %v381
        %v419 = vpack.c.b16 %v384, %v383
        %v420 = vpack.c.b16 %v386, %v385
        %v421 = vpack.c.b16 %v388, %v387
        %v422 = vpack.c.b16 %v390, %v389
        %v471 = vunpack.c.l.b16 %v247
        %v472 = vunpack.c.l.b16 %v248
        %v473 = vunpack.c.l.b16 %v249
        %v474 = vunpack.c.l.b16 %v250
        %v475 = vunpack.c.l.b16 %v251
        %v476 = vunpack.c.l.b16 %v252
        %v477 = vunpack.c.l.b16 %v253
        %v478 = vunpack.c.l.b16 %v254
        %v479 = vunpack.c.l.b16 %v255
        %v480 = vunpack.c.l.b16 %v256
        %v481 = vunpack.c.l.b16 %v257
        %v482 = vunpack.c.l.b16 %v258
        %v483 = vunpack.c.l.b16 %v259
        %v484 = vunpack.c.l.b16 %v260
        %v485 = vunpack.c.l.b16 %v261
        %v486 = vunpack.c.l.b16 %v262
        %v487 = vpack.c.b16 %v472, %v471
        %v488 = vpack.c.b16 %v474, %v473
        %v489 = vpack.c.b16 %v476, %v475
        %v490 = vpack.c.b16 %v478, %v477
        %v491 = vpack.c.b16 %v480, %v479
        %v492 = vpack.c.b16 %v482, %v481
        %v493 = vpack.c.b16 %v484, %v483
        %v494 = vpack.c.b16 %v486, %v485
        %503 = vmatpush.bf16.msra.mxu0 %v494
        %504 = vmatpush.bf16.msra.mxu0 %v493
        %505 = vmatpush.bf16.msra.mxu0 %v492
        %506 = vmatpush.bf16.msra.mxu0 %v491
        %507 = vmatpush.bf16.msra.mxu0 %v490
        %508 = vmatpush.bf16.msra.mxu0 %v489
        %509 = vmatpush.bf16.msra.mxu0 %v488
        %510 = vmatpush.bf16.msra.mxu0 %v487
        %511 = vmatmul.bf16.gmra.mxu0 %v391
        %v512 = vpop.f32.mrf.mxu0
        %v513 = vadd.f32 0.0, %v512
        %v514 = vpop.f32.mrf.mxu0
        %v515 = vadd.f32 0.0, %v514
        %516 = vmatmul.bf16.gmra.mxu0 %v392
        %v517 = vpop.f32.mrf.mxu0
        %v518 = vadd.f32 0.0, %v517
        %v519 = vpop.f32.mrf.mxu0
        %v520 = vadd.f32 0.0, %v519
        %521 = vmatmul.bf16.gmra.mxu0 %v393
        %v522 = vpop.f32.mrf.mxu0
        %v523 = vadd.f32 0.0, %v522
        %v524 = vpop.f32.mrf.mxu0
        %v525 = vadd.f32 0.0, %v524
        %526 = vmatmul.bf16.gmra.mxu0 %v394
        %v527 = vpop.f32.mrf.mxu0
        %v528 = vadd.f32 0.0, %v527
        %v529 = vpop.f32.mrf.mxu0
        %v530 = vadd.f32 0.0, %v529
        %531 = vmatmul.bf16.gmra.mxu0 %v395
        %v532 = vpop.f32.mrf.mxu0
        %v533 = vadd.f32 0.0, %v532
        %v534 = vpop.f32.mrf.mxu0
        %v535 = vadd.f32 0.0, %v534
        %536 = vmatmul.bf16.gmra.mxu0 %v396
        %v537 = vpop.f32.mrf.mxu0
        %v538 = vadd.f32 0.0, %v537
        %v539 = vpop.f32.mrf.mxu0
        %v540 = vadd.f32 0.0, %v539
        %541 = vmatmul.bf16.gmra.mxu0 %v397
        %v542 = vpop.f32.mrf.mxu0
        %v543 = vadd.f32 0.0, %v542
        %v544 = vpop.f32.mrf.mxu0
        %v545 = vadd.f32 0.0, %v544
        %546 = vmatmul.bf16.gmra.mxu0 %v398
        %v547 = vpop.f32.mrf.mxu0
        %v548 = vadd.f32 0.0, %v547
        %v549 = vpop.f32.mrf.mxu0
        %v550 = vadd.f32 0.0, %v549
        %551 = vmatmul.bf16.gmra.mxu0 %v399
        %v552 = vpop.f32.mrf.mxu0
        %v553 = vadd.f32 0.0, %v552
        %v554 = vpop.f32.mrf.mxu0
        %v555 = vadd.f32 0.0, %v554
        %556 = vmatmul.bf16.gmra.mxu0 %v400
        %v557 = vpop.f32.mrf.mxu0
        %v558 = vadd.f32 0.0, %v557
        %v559 = vpop.f32.mrf.mxu0
        %v560 = vadd.f32 0.0, %v559
        %561 = vmatmul.bf16.gmra.mxu0 %v401
        %v562 = vpop.f32.mrf.mxu0
        %v563 = vadd.f32 0.0, %v562
        %v564 = vpop.f32.mrf.mxu0
        %v565 = vadd.f32 0.0, %v564
        %566 = vmatmul.bf16.gmra.mxu0 %v402
        %v567 = vpop.f32.mrf.mxu0
        %v568 = vadd.f32 0.0, %v567
        %v569 = vpop.f32.mrf.mxu0
        %v570 = vadd.f32 0.0, %v569
        %571 = vmatmul.bf16.gmra.mxu0 %v403
        %v572 = vpop.f32.mrf.mxu0
        %v573 = vadd.f32 0.0, %v572
        %v574 = vpop.f32.mrf.mxu0
        %v575 = vadd.f32 0.0, %v574
        %576 = vmatmul.bf16.gmra.mxu0 %v404
        %v577 = vpop.f32.mrf.mxu0
        %v578 = vadd.f32 0.0, %v577
        %v579 = vpop.f32.mrf.mxu0
        %v580 = vadd.f32 0.0, %v579
        %581 = vmatmul.bf16.gmra.mxu0 %v405
        %v582 = vpop.f32.mrf.mxu0
        %v583 = vadd.f32 0.0, %v582
        %v584 = vpop.f32.mrf.mxu0
        %v585 = vadd.f32 0.0, %v584
        %586 = vmatmul.bf16.gmra.mxu0 %v406
        %v587 = vpop.f32.mrf.mxu0
        %v588 = vadd.f32 0.0, %v587
        %v589 = vpop.f32.mrf.mxu0
        %v590 = vadd.f32 0.0, %v589
        %591 = vmatmul.bf16.gmra.mxu0 %v407
        %v592 = vpop.f32.mrf.mxu0
        %v593 = vadd.f32 0.0, %v592
        %v594 = vpop.f32.mrf.mxu0
        %v595 = vadd.f32 0.0, %v594
        %596 = vmatmul.bf16.gmra.mxu0 %v408
        %v597 = vpop.f32.mrf.mxu0
        %v598 = vadd.f32 0.0, %v597
        %v599 = vpop.f32.mrf.mxu0
        %v600 = vadd.f32 0.0, %v599
        %601 = vmatmul.bf16.gmra.mxu0 %v409
        %v602 = vpop.f32.mrf.mxu0
        %v603 = vadd.f32 0.0, %v602
        %v604 = vpop.f32.mrf.mxu0
        %v605 = vadd.f32 0.0, %v604
        %606 = vmatmul.bf16.gmra.mxu0 %v410
        %v607 = vpop.f32.mrf.mxu0
        %v608 = vadd.f32 0.0, %v607
        %v609 = vpop.f32.mrf.mxu0
        %v610 = vadd.f32 0.0, %v609
        %611 = vmatmul.bf16.gmra.mxu0 %v411
        %v612 = vpop.f32.mrf.mxu0
        %v613 = vadd.f32 0.0, %v612
        %v614 = vpop.f32.mrf.mxu0
        %v615 = vadd.f32 0.0, %v614
        %616 = vmatmul.bf16.gmra.mxu0 %v412
        %v617 = vpop.f32.mrf.mxu0
        %v618 = vadd.f32 0.0, %v617
        %v619 = vpop.f32.mrf.mxu0
        %v620 = vadd.f32 0.0, %v619
        %621 = vmatmul.bf16.gmra.mxu0 %v413
        %v622 = vpop.f32.mrf.mxu0
        %v623 = vadd.f32 0.0, %v622
        %v624 = vpop.f32.mrf.mxu0
        %v625 = vadd.f32 0.0, %v624
        %626 = vmatmul.bf16.gmra.mxu0 %v414
        %v627 = vpop.f32.mrf.mxu0
        %v628 = vadd.f32 0.0, %v627
        %v629 = vpop.f32.mrf.mxu0
        %v630 = vadd.f32 0.0, %v629
        %631 = vmatmul.bf16.gmra.mxu0 %v415
        %v632 = vpop.f32.mrf.mxu0
        %v633 = vadd.f32 0.0, %v632
        %v634 = vpop.f32.mrf.mxu0
        %v635 = vadd.f32 0.0, %v634
        %636 = vmatmul.bf16.gmra.mxu0 %v416
        %v637 = vpop.f32.mrf.mxu0
        %v638 = vadd.f32 0.0, %v637
        %v639 = vpop.f32.mrf.mxu0
        %v640 = vadd.f32 0.0, %v639
        %641 = vmatmul.bf16.gmra.mxu0 %v417
        %v642 = vpop.f32.mrf.mxu0
        %v643 = vadd.f32 0.0, %v642
        %v644 = vpop.f32.mrf.mxu0
        %v645 = vadd.f32 0.0, %v644
        %646 = vmatmul.bf16.gmra.mxu0 %v418
        %v647 = vpop.f32.mrf.mxu0
        %v648 = vadd.f32 0.0, %v647
        %v649 = vpop.f32.mrf.mxu0
        %v650 = vadd.f32 0.0, %v649
        %651 = vmatmul.bf16.gmra.mxu0 %v419
        %v652 = vpop.f32.mrf.mxu0
        %v653 = vadd.f32 0.0, %v652
        %v654 = vpop.f32.mrf.mxu0
        %v655 = vadd.f32 0.0, %v654
        %656 = vmatmul.bf16.gmra.mxu0 %v420
        %v657 = vpop.f32.mrf.mxu0
        %v658 = vadd.f32 0.0, %v657
        %v659 = vpop.f32.mrf.mxu0
        %v660 = vadd.f32 0.0, %v659
        %661 = vmatmul.bf16.gmra.mxu0 %v421
        %v662 = vpop.f32.mrf.mxu0
        %v663 = vadd.f32 0.0, %v662
        %v664 = vpop.f32.mrf.mxu0
        %v665 = vadd.f32 0.0, %v664
        %666 = vmatmul.bf16.gmra.mxu0 %v422
        %v667 = vpop.f32.mrf.mxu0
        %v668 = vadd.f32 0.0, %v667
        %v669 = vpop.f32.mrf.mxu0
        %v670 = vadd.f32 0.0, %v669
        %671 = vdwg.mxu0
        %672 = vst [vmem:[%s180] sm:$0xff] %v513
        %673 = vst [vmem:[%s180 + $0x8] sm:$0xff] %v515
        %674 = vst [vmem:[%s180 + $0x10] sm:$0xff] %v518
        %675 = vst [vmem:[%s180 + $0x18] sm:$0xff] %v520
        %676 = vst [vmem:[%s180 + $0x20] sm:$0xff] %v523
        %677 = vst [vmem:[%s180 + $0x28] sm:$0xff] %v525
        %678 = vst [vmem:[%s180 + $0x30] sm:$0xff] %v528
        %679 = vst [vmem:[%s180 + $0x38] sm:$0xff] %v530
        %680 = vst [vmem:[%s180 + $0x40] sm:$0xff] %v533
        %681 = vst [vmem:[%s180 + $0x48] sm:$0xff] %v535
        %682 = vst [vmem:[%s180 + $0x50] sm:$0xff] %v538
        %683 = vst [vmem:[%s180 + $0x58] sm:$0xff] %v540
        %684 = vst [vmem:[%s180 + $0x60] sm:$0xff] %v543
        %685 = vst [vmem:[%s180 + $0x68] sm:$0xff] %v545
        %686 = vst [vmem:[%s180 + $0x70] sm:$0xff] %v548
        %687 = vst [vmem:[%s180 + $0x78] sm:$0xff] %v550
        %688 = vst [vmem:[%s180 + $0x80] sm:$0xff] %v553
        %689 = vst [vmem:[%s180 + $0x88] sm:$0xff] %v555
        %690 = vst [vmem:[%s180 + $0x90] sm:$0xff] %v558
        %691 = vst [vmem:[%s180 + $0x98] sm:$0xff] %v560
        %692 = vst [vmem:[%s180 + $0xa0] sm:$0xff] %v563
        %693 = vst [vmem:[%s180 + $0xa8] sm:$0xff] %v565
        %694 = vst [vmem:[%s180 + $0xb0] sm:$0xff] %v568
        %695 = vst [vmem:[%s180 + $0xb8] sm:$0xff] %v570
        %696 = vst [vmem:[%s180 + $0xc0] sm:$0xff] %v573
        %697 = vst [vmem:[%s180 + $0xc8] sm:$0xff] %v575
        %698 = vst [vmem:[%s180 + $0xd0] sm:$0xff] %v578
        %699 = vst [vmem:[%s180 + $0xd8] sm:$0xff] %v580
        %700 = vst [vmem:[%s180 + $0xe0] sm:$0xff] %v583
        %701 = vst [vmem:[%s180 + $0xe8] sm:$0xff] %v585
        %702 = vst [vmem:[%s180 + $0xf0] sm:$0xff] %v588
        %703 = vst [vmem:[%s180 + $0xf8] sm:$0xff] %v590
        %704 = vst [vmem:[%s180 + $0x100] sm:$0xff] %v593
        %705 = vst [vmem:[%s180 + $0x108] sm:$0xff] %v595
        %706 = vst [vmem:[%s180 + $0x110] sm:$0xff] %v598
        %707 = vst [vmem:[%s180 + $0x118] sm:$0xff] %v600
        %708 = vst [vmem:[%s180 + $0x120] sm:$0xff] %v603
        %709 = vst [vmem:[%s180 + $0x128] sm:$0xff] %v605
        %710 = vst [vmem:[%s180 + $0x130] sm:$0xff] %v608
        %711 = vst [vmem:[%s180 + $0x138] sm:$0xff] %v610
        %712 = vst [vmem:[%s180 + $0x140] sm:$0xff] %v613
        %713 = vst [vmem:[%s180 + $0x148] sm:$0xff] %v615
        %714 = vst [vmem:[%s180 + $0x150] sm:$0xff] %v618
        %715 = vst [vmem:[%s180 + $0x158] sm:$0xff] %v620
        %716 = vst [vmem:[%s180 + $0x160] sm:$0xff] %v623
        %717 = vst [vmem:[%s180 + $0x168] sm:$0xff] %v625
        %718 = vst [vmem:[%s180 + $0x170] sm:$0xff] %v628
        %719 = vst [vmem:[%s180 + $0x178] sm:$0xff] %v630
        %720 = vst [vmem:[%s180 + $0x180] sm:$0xff] %v633
        %721 = vst [vmem:[%s180 + $0x188] sm:$0xff] %v635
        %722 = vst [vmem:[%s180 + $0x190] sm:$0xff] %v638
        %723 = vst [vmem:[%s180 + $0x198] sm:$0xff] %v640
        %724 = vst [vmem:[%s180 + $0x1a0] sm:$0xff] %v643
        %725 = vst [vmem:[%s180 + $0x1a8] sm:$0xff] %v645
        %726 = vst [vmem:[%s180 + $0x1b0] sm:$0xff] %v648
        %727 = vst [vmem:[%s180 + $0x1b8] sm:$0xff] %v650
        %728 = vst [vmem:[%s180 + $0x1c0] sm:$0xff] %v653
        %729 = vst [vmem:[%s180 + $0x1c8] sm:$0xff] %v655
        %730 = vst [vmem:[%s180 + $0x1d0] sm:$0xff] %v658
        %731 = vst [vmem:[%s180 + $0x1d8] sm:$0xff] %v660
        %732 = vst [vmem:[%s180 + $0x1e0] sm:$0xff] %v663
        %733 = vst [vmem:[%s180 + $0x1e8] sm:$0xff] %v665
        %734 = vst [vmem:[%s180 + $0x1f0] sm:$0xff] %v668
        %735 = vst [vmem:[%s180 + $0x1f8] sm:$0xff] %v670
        %s736 = sand.u32 %s75, 1
        %s737 = scalar_lea.sflag [#allocation4], %s736
        %s738 = sand.u32 %s75, 1
        %s739 = smul.addr %s738, 512
        %s740 = scalar_lea.vmem [#allocation7], %s739
        // Predicated region
        $region37: #{tpu_custom_call.1} parent=27 // pred_check
          %p741 = pneg %p85
        $region38: #{tpu_custom_call.1} parent=27 // pred_check_branch
          %743 = sbr.rel (%p741) target = $region40
        $region39: #{tpu_custom_call.1} parent=27 // pred_region
          %s744 = smul.u32 64, %s20
          %746 = vsyncadd %s737, 0
          %s747 = smul.addr %s744, 8
          %s748 = scalar_lea.hbm %s2, %s747
          %s749 = sshll.u32 %s740, 4
          %s750 = int_to_ptr.vmem [resolvable:$true] %s749
          %s751 = sshll.u32 %s748, 4
          %s752 = int_to_ptr.hbm [resolvable:$true] %s751
          %757 = dma.vmem_to_hbm [thread:$0]  %s750, 8192, %s752, %s737, 128, 128, 8
        $region40: #{tpu_custom_call.1} parent=27 // pred_fallthru
          _
      $region28: #{tpu_custom_call.1} parent=5 // pred_fallthru
        _
      %p758 = scmp.le.s32.totalorder 2, %s15
      // Predicated region
      $region41: #{tpu_custom_call.1} parent=5 // pred_check
        %p759 = pneg %p758
      $region42: #{tpu_custom_call.1} parent=5 // pred_check_branch
        %761 = sbr.rel (%p759) target = $region44
      $region43: #{tpu_custom_call.1} parent=5 // pred_region
        %s762 = ssub.s32 %s15, 2
        // Predicated region
        $region45: #{tpu_custom_call.1} parent=43 // pred_check
          %p763 = pneg %p91
        $region46: #{tpu_custom_call.1} parent=43 // pred_check_branch
          %765 = sbr.rel (%p763) target = $region48
        $region47: #{tpu_custom_call.1} parent=43 // pred_region
          %s766 = sand.u32 %s76, 1
          %s767 = scalar_lea.sflag [#allocation4], %s766
          %s768 = sand.u32 %s76, 1
          %s769 = smul.addr %s768, 512
          %s770 = scalar_lea.vmem [#allocation7], %s769
          %772 = dma.done %s767, 8192
        $region48: #{tpu_custom_call.1} parent=43 // pred_fallthru
          _
      $region44: #{tpu_custom_call.1} parent=5 // pred_fallthru
        _
    $region6: #{tpu_custom_call.1} parent=1 // loop_footer
      %s19 = sadd.s32 1, %s15
    $region7: #{tpu_custom_call.1} parent=1 // loop_footer_branch
      %14 = sbr.rel target = $region3
    $region8: #{tpu_custom_call.1} parent=1 // loop_exit
      _
    %773 = vsyncpa [#allocation3], 1
    %s774 = scalar_lea.sflag [#allocation3], 1
    %775 = vsyncpa %s774, 1
    %776 = vsyncpa [#allocation6], 1
    %777 = vsyncpa [#allocation4], 1
    %s778 = scalar_lea.sflag [#allocation4], 1
    %779 = vsyncpa %s778, 1

</llo_original>
